<compile_context>
chip_gen: v6e
topology: v6e:2x2x1
jax: 0.10.0
libtpu: 0.0.40
codegen_flags: <defaults>
</compile_context>

<pallas_src>
import functools

import jax
import jax.numpy as jnp
from jax.experimental import pallas as pl
from jax.experimental.pallas import tpu as pltpu


def _symmetrical_loss_kernel(img_ref, txt_ref, o_ref, *, eps, n_rows, block_b,
                             blocks_per_split, needs_mask):
    c = pl.program_id(0)   # parallel split (one per TensorCore on v7x)
    i = pl.program_id(1)   # reduction over row-blocks within the split

    @pl.when(i == 0)
    def _():
        o_ref[...] = jnp.zeros_like(o_ref)

    img = img_ref[...]
    txt = txt_ref[...]
    # Up-cast only when the input dtype is narrower than f32.
    if img.dtype != jnp.float32:
        img = img.astype(jnp.float32)
    if txt.dtype != jnp.float32:
        txt = txt.astype(jnp.float32)

    # Row-wise cosine similarity over the feature (lane) axis.
    dot = jnp.sum(img * txt, axis=-1, keepdims=True)   # (bb, 1)
    w1 = jnp.sum(img * img, axis=-1, keepdims=True)    # (bb, 1)  |img|^2
    w2 = jnp.sum(txt * txt, axis=-1, keepdims=True)    # (bb, 1)  |txt|^2
    # torch CosineSimilarity: x.y / max(|x||y|, eps) == x.y * rsqrt(max(|x|^2|y|^2, eps^2))
    inv_denom = jax.lax.rsqrt(jnp.maximum(w1 * w2, eps * eps))
    sim = dot * inv_denom                               # (bb, 1) in [-1, 1]

    # BCE-with-logits vs target=1: softplus(-sim). sim in [-1,1] -> numerically safe.
    per_row = jnp.log1p(jnp.exp(-sim))                  # (bb, 1)

    if needs_mask:
        # Zero out rows past the true batch size (tail block of the grid).
        row0 = (c * blocks_per_split + i) * block_b
        rows = row0 + jax.lax.broadcasted_iota(jnp.int32, per_row.shape, 0)
        per_row = jnp.where(rows < n_rows, per_row, 0.0)

    # Accumulate the partial row-sum directly into the resident (1,1) output block.
    o_ref[...] += jnp.sum(per_row, axis=0, keepdims=True)


def _round_down(x, m):
    return (x // m) * m


def symmetrical_loss(image_embeddings, text_embeddings, *, eps=1e-8,
                     block_b=None, num_splits=None):
    """image_embeddings, text_embeddings: [..., D] with matching shapes; returns scalar loss."""
    assert image_embeddings.shape == text_embeddings.shape
    D = image_embeddings.shape[-1]
    img = image_embeddings.reshape(-1, D)
    txt = text_embeddings.reshape(-1, D)
    B = img.shape[0]

    itemsize = jnp.dtype(img.dtype).itemsize
    sub = max(8, 32 // itemsize)          # sublane multiple: 8 (f32), 16 (bf16), 32 (int8)

    # Generation-aware VMEM budget (v5e/v6e: 128 MiB physical, v7x: 64 MiB).
    try:
        vmem_cap = int(pltpu.get_tpu_info().vmem_capacity_bytes)
    except Exception:
        vmem_cap = 128 * 1024 * 1024
    budget = min(int(vmem_cap * 0.6), 96 * 1024 * 1024)

    if block_b is None:
        # Pick block_b by bytes: ~4 MiB per input tile, capped so the
        # double-buffered working set (2 inputs x 2 buffers) fits the budget.
        target_tile_bytes = 4 * 1024 * 1024
        bb = max(sub, target_tile_bytes // (D * itemsize))
        bb_cap = max(sub, budget // (4 * D * itemsize))
        bb = _round_down(min(bb, bb_cap), sub)
        bb = max(bb, sub)
        if bb >= B:
            bb = B   # full-extent row block is always legal
        block_b = int(bb)

    n_blocks = -(-B // block_b)           # cdiv
    needs_mask = (B % block_b) != 0

    # Use both TensorCores on v7x via a leading "parallel" axis when the block
    # count splits evenly; harmless (sequential) on single-TC v5e/v6e.
    if num_splits is None:
        num_splits = 2 if (n_blocks >= 2 and n_blocks % 2 == 0) else 1
    blocks_per_split = n_blocks // num_splits

    working_set = 4 * block_b * D * itemsize   # 2 inputs x 2 pipeline buffers
    vmem_limit = int(min(vmem_cap, max(working_set + (16 << 20), 32 << 20)))

    kernel = functools.partial(
        _symmetrical_loss_kernel,
        eps=float(eps), n_rows=B, block_b=block_b,
        blocks_per_split=blocks_per_split, needs_mask=needs_mask)

    partials = pl.pallas_call(
        kernel,
        out_shape=jax.ShapeDtypeStruct((num_splits, 1), jnp.float32),
        grid_spec=pltpu.PrefetchScalarGridSpec(
            num_scalar_prefetch=0,
            grid=(num_splits, blocks_per_split),
            in_specs=[
                pl.BlockSpec((block_b, D),
                             lambda c, i: (c * blocks_per_split + i, 0)),  # image rows
                pl.BlockSpec((block_b, D),
                             lambda c, i: (c * blocks_per_split + i, 0)),  # text rows
            ],
            # Each split owns one (1,1) output block, resident across the whole
            # reduction axis -> in-VMEM accumulator.
            out_specs=pl.BlockSpec((1, 1), lambda c, i: (c, 0)),
        ),
        compiler_params=pltpu.CompilerParams(
            dimension_semantics=("parallel", "arbitrary"),
            vmem_limit_bytes=vmem_limit),
    )(img, txt)

    # sim(img,txt) == sim(txt,img)  ->  loss_i2t == loss_t2i  ->  total = 2 * mean.
    return jnp.sum(partials) * (2.0 / B)


def _reference(image_embeddings, text_embeddings, eps=1e-8):
    x = image_embeddings.astype(jnp.float32)
    y = text_embeddings.astype(jnp.float32)
    dot = jnp.sum(x * y, axis=-1)
    w1 = jnp.sum(x * x, axis=-1)
    w2 = jnp.sum(y * y, axis=-1)
    sim = dot / jnp.sqrt(jnp.maximum(w1 * w2, eps * eps))
    # BCE-with-logits, target=1, mean reduction; both directions are identical.
    return 2.0 * jnp.mean(jnp.log1p(jnp.exp(-sim)))


if __name__ == "__main__":
    # Small shapes consistent with the CLIP-style module: batch 16, embedding dim 64.
    B, D = 16, 64

    key = jax.random.PRNGKey(0)
    k_img, k_txt = jax.random.split(key)
    image_embeddings = jax.random.normal(k_img, (B, D), dtype=jnp.float32)
    text_embeddings = jax.random.normal(k_txt, (B, D), dtype=jnp.float32)

    loss = symmetrical_loss(image_embeddings, text_embeddings)
    loss = jax.block_until_ready(loss)

    ref = _reference(image_embeddings, text_embeddings)
    assert loss.shape == ()
    assert jnp.allclose(loss, ref, atol=1e-5, rtol=1e-5), (loss, ref)

    print("KERNEL_OK")
</pallas_src>

<mosaic_0001>
module attributes {stable_mosaic.version = 11 : i64} {
  func.func @_symmetrical_loss_kernel(%arg0: i32, %arg1: i32, %arg2: memref<16x64xf32, #tpu.memory_space<vmem>>, %arg3: memref<16x64xf32, #tpu.memory_space<vmem>>, %arg4: memref<1x1xf32, #tpu.memory_space<vmem>>) attributes {dimension_semantics = [#tpu.dimension_semantics<parallel>, #tpu.dimension_semantics<arbitrary>], iteration_bounds = array<i64: 1, 1>, scalar_prefetch = 0 : i64, scratch_operands = 0 : i64, tpu.core_type = #tpu.core_type<tc>, window_params = [{transform_indices = @transform_0, window_bounds = array<i64: 16, 64>}, {transform_indices = @transform_1, window_bounds = array<i64: 16, 64>}, {transform_indices = @transform_2, window_bounds = array<i64: 1, 1>}]} {
    %c0_i32 = arith.constant 0 : i32
    %0 = arith.cmpi eq, %arg1, %c0_i32 : i32
    %1 = arith.extui %0 : i1 to i32
    %c0_i32_0 = arith.constant 0 : i32
    %2 = arith.cmpi ne, %1, %c0_i32_0 : i32
    scf.if %2 {
      %cst_13 = arith.constant 0.000000e+00 : f32
      %28 = vector.broadcast %cst_13 : f32 to vector<1x1xf32>
      %c0_14 = arith.constant 0 : index
      %c0_15 = arith.constant 0 : index
      %29 = vector.load %arg4[%c0_14, %c0_15] : memref<1x1xf32, #tpu.memory_space<vmem>>, vector<1x1xf32>
      tpu.vector_store %arg4[%c0_14, %c0_15], %28 {strides = array<i32>} : memref<1x1xf32, #tpu.memory_space<vmem>>, vector<1x1xf32>,
    } else {
    }
    %c0 = arith.constant 0 : index
    %c0_1 = arith.constant 0 : index
    %3 = vector.load %arg2[%c0, %c0_1] : memref<16x64xf32, #tpu.memory_space<vmem>>, vector<16x64xf32>
    %c0_2 = arith.constant 0 : index
    %c0_3 = arith.constant 0 : index
    %4 = vector.load %arg3[%c0_2, %c0_3] : memref<16x64xf32, #tpu.memory_space<vmem>>, vector<16x64xf32>
    %5 = arith.mulf %3, %4 : vector<16x64xf32>
    %cst = arith.constant dense<0.000000e+00> : vector<16xf32>
    %6 = vector.multi_reduction <add>, %5, %cst [1] : vector<16x64xf32> to vector<16xf32>
    %7 = vector.shape_cast %6 : vector<16xf32> to vector<16x1xf32>
    %8 = arith.mulf %3, %3 : vector<16x64xf32>
    %cst_4 = arith.constant dense<0.000000e+00> : vector<16xf32>
    %9 = vector.multi_reduction <add>, %8, %cst_4 [1] : vector<16x64xf32> to vector<16xf32>
    %10 = vector.shape_cast %9 : vector<16xf32> to vector<16x1xf32>
    %11 = arith.mulf %4, %4 : vector<16x64xf32>
    %cst_5 = arith.constant dense<0.000000e+00> : vector<16xf32>
    %12 = vector.multi_reduction <add>, %11, %cst_5 [1] : vector<16x64xf32> to vector<16xf32>
    %13 = vector.shape_cast %12 : vector<16xf32> to vector<16x1xf32>
    %14 = arith.mulf %10, %13 : vector<16x1xf32>
    %cst_6 = arith.constant 1.000000e-16 : f32
    %15 = vector.broadcast %cst_6 : f32 to vector<16x1xf32>
    %16 = arith.maximumf %14, %15 : vector<16x1xf32>
    %17 = math.rsqrt %16 : vector<16x1xf32>
    %18 = arith.mulf %7, %17 : vector<16x1xf32>
    %cst_7 = arith.constant 0.000000e+00 : f32
    %19 = vector.broadcast %cst_7 : f32 to vector<16x1xf32>
    %20 = arith.subf %19, %18 : vector<16x1xf32>
    %21 = math.exp %20 : vector<16x1xf32>
    %22 = math.log1p %21 : vector<16x1xf32>
    %c0_8 = arith.constant 0 : index
    %c0_9 = arith.constant 0 : index
    %23 = vector.load %arg4[%c0_8, %c0_9] : memref<1x1xf32, #tpu.memory_space<vmem>>, vector<1x1xf32>
    %cst_10 = arith.constant dense<0.000000e+00> : vector<1xf32>
    %24 = vector.multi_reduction <add>, %22, %cst_10 [0] : vector<16x1xf32> to vector<1xf32>
    %25 = vector.shape_cast %24 : vector<1xf32> to vector<1x1xf32>
    %26 = arith.addf %23, %25 : vector<1x1xf32>
    %c0_11 = arith.constant 0 : index
    %c0_12 = arith.constant 0 : index
    %27 = vector.load %arg4[%c0_11, %c0_12] : memref<1x1xf32, #tpu.memory_space<vmem>>, vector<1x1xf32>
    tpu.vector_store %arg4[%c0_11, %c0_12], %26 {strides = array<i32>} : memref<1x1xf32, #tpu.memory_space<vmem>>, vector<1x1xf32>,
    return
  }
  func.func @transform_0(%arg0: i32, %arg1: i32) -> (i32, i32) {
    %c1_i32 = arith.constant 1 : i32
    %0 = arith.muli %arg0, %c1_i32 : i32
    %1 = arith.addi %0, %arg1 : i32
    %c0_i32 = arith.constant 0 : i32
    %c0_i32_0 = arith.constant 0 : i32
    return %1, %c0_i32 : i32, i32
  }
  func.func @transform_1(%arg0: i32, %arg1: i32) -> (i32, i32) {
    %c1_i32 = arith.constant 1 : i32
    %0 = arith.muli %arg0, %c1_i32 : i32
    %1 = arith.addi %0, %arg1 : i32
    %c0_i32 = arith.constant 0 : i32
    %c0_i32_0 = arith.constant 0 : i32
    return %1, %c0_i32 : i32, i32
  }
  func.func @transform_2(%arg0: i32, %arg1: i32) -> (i32, i32) {
    %c0_i32 = arith.constant 0 : i32
    %c0_i32_0 = arith.constant 0 : i32
    return %arg0, %c0_i32 : i32, i32
  }
}

</mosaic_0001>

<llo_original>
// kernel: tpu_custom_call.1
$region0: #{tpu_custom_call.1}
  #allocation0 [shape = 'u32[]', space=smem, size = 0x4, offset = 0x4, fixed_abs, tag = 'smem constant byte address 0x4 - core index']
  #allocation1 [shape = 'u32[144,128]{1,0:T(1,128)}', space=vmem, size = 0x12000, scoped, tag = 'internal scratch']
  %s0 = inlined_call_operand.hbm [shape: f32[16,64], index: 0, kind: input, shape index: {}]
  %s1 = inlined_call_operand.hbm [shape: f32[16,64], index: 1, kind: input, shape index: {}]
  %s2 = inlined_call_operand.hbm [shape: f32[1,1], index: 2, kind: output, shape index: {}]
  %s3 = sld [smem:[#allocation0]]
  $region30: #{tpu_custom_call.1} parent=0
    _
  %s5 = ssub.s32 1, %s3
  %s6 = scalar_select 0, %s5, %s3
  $region1: #{tpu_custom_call.1} parent=0
    #allocation2 [shape = 'u8[8192]{0}', space=vmem, size = 0x2000, scoped, tag = 'input window, operand 0, single buffered']
    #allocation3 [shape = 's32[1]{0}', space=sflag, size = 0x4, scoped, tag = 'scoped memory for tpu_custom_call.1']
    #allocation4 [shape = 's32[1]{0}', space=sflag, size = 0x4, scoped, tag = 'scoped memory for tpu_custom_call.1']
    #allocation5 [shape = 'u8[8192]{0}', space=vmem, size = 0x2000, scoped, tag = 'input window, operand 1, single buffered']
    #allocation6 [shape = 's32[1]{0}', space=sflag, size = 0x4, scoped, tag = 'scoped memory for tpu_custom_call.1']
    #allocation7 [shape = 'u8[512]{0}', space=vmem, size = 0x400, scoped, tag = 'output window, operand 0, single buffered']
    %7 = vsyncpa [#allocation3], 0
    %8 = vsyncpa [#allocation6], 0
    %9 = vsyncpa [#allocation4], 0
    // Predicated region
    $region2: #{tpu_custom_call.1} parent=1 // pred_check
      _
    $region3: #{tpu_custom_call.1} parent=1 // pred_check_branch
      %11 = sbr.rel (0) target = $region5
    $region4: #{tpu_custom_call.1} parent=1 // pred_region
      %s12 = sadd.s32 0, 0
      %s13 = smul.u32 2, %s12
      %s15 = ssub.s32 256, 256
      %16 = vsyncadd [#allocation3], %s15
      %s17 = smul.addr %s13, 128
      %s18 = scalar_lea.hbm %s0, %s17
      %s19 = sshll.u32 [#allocation2], 4
      %s20 = int_to_ptr.vmem [resolvable:$true] %s19
      %25 = dma.hbm_to_vmem [thread:$0]  %s18, 256, %s20, [#allocation3], 128, 128, 8
    $region5: #{tpu_custom_call.1} parent=1 // pred_fallthru
      _
    // Predicated region
    $region6: #{tpu_custom_call.1} parent=1 // pred_check
      _
    $region7: #{tpu_custom_call.1} parent=1 // pred_check_branch
      %27 = sbr.rel (0) target = $region9
    $region8: #{tpu_custom_call.1} parent=1 // pred_region
      %s28 = sadd.s32 0, 0
      %s29 = smul.u32 2, %s28
      %s31 = ssub.s32 256, 256
      %32 = vsyncadd [#allocation6], %s31
      %s33 = smul.addr %s29, 128
      %s34 = scalar_lea.hbm %s1, %s33
      %s35 = sshll.u32 [#allocation5], 4
      %s36 = int_to_ptr.vmem [resolvable:$true] %s35
      %41 = dma.hbm_to_vmem [thread:$0]  %s34, 256, %s36, [#allocation6], 128, 128, 8
    $region9: #{tpu_custom_call.1} parent=1 // pred_fallthru
      _
    // Predicated region
    $region10: #{tpu_custom_call.1} parent=1 // pred_check
      _
    $region11: #{tpu_custom_call.1} parent=1 // pred_check_branch
      %43 = sbr.rel (0) target = $region13
    $region12: #{tpu_custom_call.1} parent=1 // pred_region
      %44 = dma.done [#allocation3], 256
    $region13: #{tpu_custom_call.1} parent=1 // pred_fallthru
      _
    // Predicated region
    $region14: #{tpu_custom_call.1} parent=1 // pred_check
      _
    $region15: #{tpu_custom_call.1} parent=1 // pred_check_branch
      %46 = sbr.rel (0) target = $region17
    $region16: #{tpu_custom_call.1} parent=1 // pred_region
      %47 = dma.done [#allocation6], 256
    $region17: #{tpu_custom_call.1} parent=1 // pred_fallthru
      _
    %s48 = sadd.s32 0, 0
    %s49 = smul.u32 2, %s48
    %s50 = sadd.s32 0, 0
    %s51 = smul.u32 2, %s50
    %p52 = scmp.eq.s32.totalorder 0, 0
    // Predicated region
    $region18: #{tpu_custom_call.1} parent=1 // pred_check
      %p53 = pneg %p52
    $region19: #{tpu_custom_call.1} parent=1 // pred_check_branch
      %55 = sbr.rel (%p53) target = $region21
    $region20: #{tpu_custom_call.1} parent=1 // pred_region
      %vm56 = vcmask 0
      %57 = vst.msk [vmem:[#allocation7] sm:$0x1] %vm56, 0.0
    $region21: #{tpu_custom_call.1} parent=1 // pred_fallthru
      _
    %v58 = vld [vmem:[#allocation2] sm:$0xff]
    %v59 = vld [vmem:[#allocation2 + $0x8] sm:$0xff]
    %v60 = vld [vmem:[#allocation5] sm:$0xff]
    %v61 = vld [vmem:[#allocation5 + $0x8] sm:$0xff]
    %v62 = vmul.f32 %v58, %v60
    %v63 = vmul.f32 %v59, %v61
    %vm64 = vcmask 523264
    %v65 = vsel %vm64, %v62, 0.0
    %66 = vadd.xlane.f32.xlu0 %v65
    %v67 = vpop.xlane.xlu0 %66
    %v68 = vsel %vm64, %v63, 0.0
    %69 = vadd.xlane.f32.xlu0 %v68
    %v70 = vpop.xlane.xlu0 %69
    %v71 = vmul.f32 %v58, %v58
    %v72 = vmul.f32 %v59, %v59
    %v73 = vsel %vm64, %v71, 0.0
    %74 = vadd.xlane.f32.xlu0 %v73
    %v75 = vpop.xlane.xlu0 %74
    %v76 = vsel %vm64, %v72, 0.0
    %77 = vadd.xlane.f32.xlu0 %v76
    %v78 = vpop.xlane.xlu0 %77
    %v79 = vmul.f32 %v60, %v60
    %v80 = vmul.f32 %v61, %v61
    %v81 = vsel %vm64, %v79, 0.0
    %82 = vadd.xlane.f32.xlu0 %v81
    %v83 = vpop.xlane.xlu0 %82
    %v84 = vsel %vm64, %v80, 0.0
    %85 = vadd.xlane.f32.xlu0 %v84
    %v86 = vpop.xlane.xlu0 %85
    %v87 = vmul.f32 %v75, %v83
    %v88 = vmul.f32 %v78, %v86
    %v89 = vmax.f32 %v87, 1e-16
    %v90 = vmax.f32 %v88, 1e-16
    %v91 = vrsqrt.pop %v89
    %v92 = vrsqrt.pop %v90
    %v93 = vmul.f32 %v67, %v91
    %v94 = vmul.f32 %v70, %v92
    %v95 = vsub.f32 0.0, %v93
    %v96 = vsub.f32 0.0, %v94
    %v97 = vmul.f32 %v95, 1.442695
    %v98 = vpow.pop %v97
    %v99 = vmul.f32 %v96, 1.442695
    %v100 = vpow.pop %v99
    %v101 = vadd.f32 %v98, 1.0
    %v102 = vlog2.pop %v101
    %v103 = vmul.f32 %v102, 0.6931472
    %v104 = vmul.f32 -0.5, %v98
    %v105 = vadd.f32 %v104, 1.0
    %v106 = vmul.f32 %v105, %v98
    %v107 = vand.u32 2147483647, %v98
    %vm108 = vcmp.lt.f32.partialorder %v107, 0.0004427343
    %v109 = vsel %vm108, %v106, %v103
    %v110 = vadd.f32 %v100, 1.0
    %v111 = vlog2.pop %v110
    %v112 = vmul.f32 %v111, 0.6931472
    %v113 = vmul.f32 -0.5, %v100
    %v114 = vadd.f32 %v113, 1.0
    %v115 = vmul.f32 %v114, %v100
    %v116 = vand.u32 2147483647, %v100
    %vm117 = vcmp.lt.f32.partialorder %v116, 0.0004427343
    %v118 = vsel %vm117, %v115, %v112
    %v119 = vld [vmem:[#allocation7] sm:$0x1]
    %v120 = vadd.f32 %v109, %v118
    %v121 = vrot.slane %v120, 4
    %v122 = vadd.f32 %v120, %v121
    %v123 = vrot.slane %v122, 2
    %v124 = vadd.f32 %v122, %v123
    %v125 = vrot.slane %v124, 1
    %v126 = vadd.f32 %v124, %v125
    %v127 = vadd.f32 %v119, %v126
    %vm128 = vcmask 0
    %129 = vst.msk [vmem:[#allocation7] sm:$0x1] %vm128, %v127
    // Predicated region
    $region22: #{tpu_custom_call.1} parent=1 // pred_check
      _
    $region23: #{tpu_custom_call.1} parent=1 // pred_check_branch
      %131 = sbr.rel (0) target = $region25
    $region24: #{tpu_custom_call.1} parent=1 // pred_region
      %s133 = ssub.s32 16, 16
      %134 = vsyncadd [#allocation4], %s133
      %s136 = sshll.u32 [#allocation7], 4
      %s137 = int_to_ptr.vmem [resolvable:$true] %s136
      %139 = dma.vmem_to_hbm [thread:$0]  %s137, 16, %s2, [#allocation4]
    $region25: #{tpu_custom_call.1} parent=1 // pred_fallthru
      _
    // Predicated region
    $region26: #{tpu_custom_call.1} parent=1 // pred_check
      _
    $region27: #{tpu_custom_call.1} parent=1 // pred_check_branch
      %141 = sbr.rel (0) target = $region29
    $region28: #{tpu_custom_call.1} parent=1 // pred_region
      %142 = dma.done [#allocation4], 16
    $region29: #{tpu_custom_call.1} parent=1 // pred_fallthru
      _
    %143 = vsyncpa [#allocation3], 1
    %144 = vsyncpa [#allocation6], 1
    %145 = vsyncpa [#allocation4], 1

</llo_original>
